<compile_context>
chip_gen: v7x
topology: tpu7x:2x2x1
jax: 0.10.0
libtpu: 0.0.40
codegen_flags: <defaults>
</compile_context>

<pallas_src>
import functools

import numpy as np
import jax
import jax.numpy as jnp
from jax.experimental import pallas as pl
from jax.experimental.pallas import tpu as pltpu


@functools.lru_cache(maxsize=None)
def _bilinear_matrix(out_size: int, in_size: int) -> np.ndarray:
    """Row-interpolation matrix matching torch bilinear, align_corners=False."""
    scale = in_size / out_size
    dst = np.arange(out_size, dtype=np.float64)
    src = np.maximum((dst + 0.5) * scale - 0.5, 0.0)
    i0 = np.minimum(np.floor(src).astype(np.int64), in_size - 1)
    i1 = np.minimum(i0 + 1, in_size - 1)
    frac = src - i0
    R = np.zeros((out_size, in_size), dtype=np.float64)
    R[np.arange(out_size), i0] += (1.0 - frac)
    R[np.arange(out_size), i1] += frac
    return R


def _pe_kernel(x_ref, ry_ref, rxt_ref, o_ref):
    # x_ref  : (Kb, C, H_in, W_in)    bf16  images (triple k uses image k)
    # ry_ref : (Kb, H_out, H_in)      bf16  height crop+resize matrices
    # rxt_ref: (Kb, W_in, W_out)      bf16  width  crop+resize matrices (pre-transposed)
    # o_ref  : (Kb, C, H_out, W_out)  f32   resized crops
    kb, c, h_in, w_in = x_ref.shape
    h_out = ry_ref.shape[1]
    w_out = rxt_ref.shape[2]

    x = x_ref[...]
    ry = ry_ref[...]
    rxt = rxt_ref[...]

    # Width resize: ONE batched MXU matmul over the Kb triples (C and H_in are
    # merged into the M dim -> better MXU row utilization than per-channel).
    xw = jnp.einsum('kms,ksw->kmw',
                    x.reshape(kb, c * h_in, w_in), rxt,
                    preferred_element_type=jnp.float32)         # (Kb, C*H_in, W_out)
    xw = xw.astype(jnp.bfloat16).reshape(kb * c, h_in, w_out)

    # Height resize: batched MXU matmul with batch = Kb*C (Ry broadcast across
    # C; leading-dim broadcast/reshape only — no lane/sublane relayout).
    ry_b = jnp.broadcast_to(ry[:, None], (kb, c, h_out, h_in))
    ry_b = ry_b.reshape(kb * c, h_out, h_in)
    out = jnp.einsum('bhr,brw->bhw', ry_b, xw,
                     preferred_element_type=jnp.float32)        # (Kb*C, H_out, W_out)

    o_ref[...] = out.reshape(kb, c, h_out, w_out)


class PE:
    """JAX/Pallas port of the PyTorch PE module (per-triple crop + bilinear resize)."""

    def __init__(self, coord, block_k: int = 8):
        self.coord = [int(v) for v in coord]
        if len(self.coord) % 3 != 0:
            raise ValueError("coord length must be a multiple of 3")
        self.num_patches = len(self.coord) // 3
        # Kb triples per grid step (amortizes the ~0.35 us per-step overhead).
        self.block_k = max(1, min(block_k, self.num_patches)) if self.num_patches else 1
        self.k_pad = (-(-self.num_patches // self.block_k) * self.block_k
                      if self.num_patches else 0)
        self._mat_cache = {}   # (H, W) -> (ry bf16 (K_pad,H,H), rxt bf16 (K_pad,W,W))

    def _matrices(self, h: int, w: int):
        key = (h, w)
        cached = self._mat_cache.get(key)
        if cached is not None:
            return cached
        k_pad = self.k_pad
        ry = np.zeros((k_pad, h, h), dtype=np.float32)
        rxt = np.zeros((k_pad, w, w), dtype=np.float32)
        for k in range(self.num_patches):
            p, i1, i2 = self.coord[3 * k:3 * k + 3]
            if p < 1 or i1 < 0 or i2 < 0 or i1 + p > h or i2 + p > w:
                raise ValueError(
                    f"coord triple {k} (pwidth={p}, i1={i1}, i2={i2}) is out of "
                    f"bounds for a {h}x{w} image")
            ry[k, :, i1:i1 + p] = _bilinear_matrix(h, p)        # crop row offset baked in
            rxt[k, i2:i2 + p, :] = _bilinear_matrix(w, p).T     # crop col offset, pre-transposed
        cached = (jnp.asarray(ry, dtype=jnp.bfloat16),
                  jnp.asarray(rxt, dtype=jnp.bfloat16))
        self._mat_cache[key] = cached
        return cached

    def __call__(self, inputs):
        x = jnp.asarray(inputs)
        n, c, h, w = (int(d) for d in x.shape)
        k = self.num_patches
        if k == 0:
            return jnp.zeros((0, c, h, w), dtype=jnp.float32)
        if k > n:
            raise ValueError(
                f"coord references image {k - 1} but the batch only has {n} images")

        ry, rxt = self._matrices(h, w)                 # cached bf16 device arrays
        kb, k_pad = self.block_k, self.k_pad

        x_sel = x[:k].astype(jnp.bfloat16)             # triple k uses image k
        if k_pad != k:
            x_sel = jnp.pad(x_sel, ((0, k_pad - k), (0, 0), (0, 0), (0, 0)))

        out = pl.pallas_call(
            _pe_kernel,
            out_shape=jax.ShapeDtypeStruct((k_pad, c, h, w), jnp.float32),
            grid=(k_pad // kb,),
            in_specs=[
                pl.BlockSpec((kb, c, h, w), lambda g: (g, 0, 0, 0)),
                pl.BlockSpec((kb, h, h), lambda g: (g, 0, 0)),
                pl.BlockSpec((kb, w, w), lambda g: (g, 0, 0)),
            ],
            out_specs=pl.BlockSpec((kb, c, h, w), lambda g: (g, 0, 0, 0)),
            compiler_params=pltpu.CompilerParams(
                dimension_semantics=("parallel",),
                vmem_limit_bytes=32 * 1024 * 1024),
        )(x_sel, ry, rxt)

        return out[:k] if k_pad != k else out


def _reference(x_np, coord, H, W):
    """Pure-numpy separable bilinear reference (same math, f64)."""
    K = len(coord) // 3
    outs = []
    for k in range(K):
        p = int(coord[3 * k]); i1 = int(coord[3 * k + 1]); i2 = int(coord[3 * k + 2])
        ry = _bilinear_matrix(H, p)
        rx = _bilinear_matrix(W, p)
        crop = np.asarray(x_np)[k, :, i1:i1 + p, i2:i2 + p].astype(np.float64)
        outs.append(np.einsum('hr,crq,wq->chw', ry, crop, rx))
    return np.stack(outs, axis=0)


if __name__ == "__main__":
    key = jax.random.PRNGKey(0)
    x = jax.random.normal(key, (2, 4, 16, 16), dtype=jnp.float32)
    # Two patches: 8x8 crop at (2,3) from image 0, 6x6 crop at (4,5) from image 1.
    coord = [8, 2, 3, 6, 4, 5]

    pe = PE(coord)
    out = pe(x)
    jax.block_until_ready(out)

    assert out.shape == (2, 4, 16, 16), out.shape
    assert out.dtype == jnp.float32

    ref = _reference(np.asarray(x), coord, 16, 16)
    err = float(np.max(np.abs(np.asarray(out) - ref)))
    # bf16 operands with f32 accumulation -> errors of a few * 2^-8 relative.
    assert np.allclose(np.asarray(out), ref, rtol=5e-2, atol=5e-2), err

    print("KERNEL_OK")
</pallas_src>

<mosaic_0001>
module attributes {stable_mosaic.version = 11 : i64} {
  func.func @_pe_kernel(%arg0: i32, %arg1: memref<2x4x16x16xbf16, #tpu.memory_space<vmem>>, %arg2: memref<2x16x16xbf16, #tpu.memory_space<vmem>>, %arg3: memref<2x16x16xbf16, #tpu.memory_space<vmem>>, %arg4: memref<2x4x16x16xf32, #tpu.memory_space<vmem>>) attributes {dimension_semantics = [#tpu.dimension_semantics<parallel>], iteration_bounds = array<i64: 1>, scalar_prefetch = 0 : i64, scratch_operands = 0 : i64, tpu.core_type = #tpu.core_type<tc>, window_params = [{transform_indices = @transform_0, window_bounds = array<i64: 2, 4, 16, 16>}, {transform_indices = @transform_1, window_bounds = array<i64: 2, 16, 16>}, {transform_indices = @transform_2, window_bounds = array<i64: 2, 16, 16>}, {transform_indices = @transform_3, window_bounds = array<i64: 2, 4, 16, 16>}]} {
    %c0 = arith.constant 0 : index
    %c0_0 = arith.constant 0 : index
    %c0_1 = arith.constant 0 : index
    %c0_2 = arith.constant 0 : index
    %0 = vector.load %arg1[%c0, %c0_0, %c0_1, %c0_2] : memref<2x4x16x16xbf16, #tpu.memory_space<vmem>>, vector<2x4x16x16xbf16>
    %c0_3 = arith.constant 0 : index
    %c0_4 = arith.constant 0 : index
    %c0_5 = arith.constant 0 : index
    %1 = vector.load %arg2[%c0_3, %c0_4, %c0_5] : memref<2x16x16xbf16, #tpu.memory_space<vmem>>, vector<2x16x16xbf16>
    %c0_6 = arith.constant 0 : index
    %c0_7 = arith.constant 0 : index
    %c0_8 = arith.constant 0 : index
    %2 = vector.load %arg3[%c0_6, %c0_7, %c0_8] : memref<2x16x16xbf16, #tpu.memory_space<vmem>>, vector<2x16x16xbf16>
    %3 = vector.shape_cast %0 : vector<2x4x16x16xbf16> to vector<2x64x16xbf16>
    "tpu.trace_start"() <{level = 10 : i32, message = "kms,ksw->kmw"}> : () -> ()
    %cst = arith.constant dense<0.000000e+00> : vector<2x64x16xf32>
    %4 = tpu.matmul %3, %2, %cst {dimension_numbers = #tpu.dot_dimension_numbers<[2], [1], [1], [2], [0, 0, 0, 1, 1, 2], [0], [0]>} : vector<2x64x16xbf16>, vector<2x16x16xbf16>, vector<2x64x16xf32> -> vector<2x64x16xf32>
    "tpu.trace_stop"() : () -> ()
    %5 = arith.truncf %4 : vector<2x64x16xf32> to vector<2x64x16xbf16>
    %6 = vector.shape_cast %5 : vector<2x64x16xbf16> to vector<8x16x16xbf16>
    %7 = vector.shape_cast %1 : vector<2x16x16xbf16> to vector<2x1x16x16xbf16>
    %8 = vector.shape_cast %7 : vector<2x1x16x16xbf16> to vector<2x1x16x16xbf16>
    %9 = vector.broadcast %8 : vector<2x1x16x16xbf16> to vector<2x4x16x16xbf16>
    %10 = vector.shape_cast %9 : vector<2x4x16x16xbf16> to vector<8x16x16xbf16>
    "tpu.trace_start"() <{level = 10 : i32, message = "bhr,brw->bhw"}> : () -> ()
    %cst_9 = arith.constant dense<0.000000e+00> : vector<8x16x16xf32>
    %11 = tpu.matmul %10, %6, %cst_9 {dimension_numbers = #tpu.dot_dimension_numbers<[2], [1], [1], [2], [0, 0, 0, 1, 1, 2], [0], [0]>} : vector<8x16x16xbf16>, vector<8x16x16xbf16>, vector<8x16x16xf32> -> vector<8x16x16xf32>
    "tpu.trace_stop"() : () -> ()
    %12 = vector.shape_cast %11 : vector<8x16x16xf32> to vector<2x4x16x16xf32>
    %c0_10 = arith.constant 0 : index
    %c0_11 = arith.constant 0 : index
    %c0_12 = arith.constant 0 : index
    %c0_13 = arith.constant 0 : index
    %13 = vector.load %arg4[%c0_10, %c0_11, %c0_12, %c0_13] : memref<2x4x16x16xf32, #tpu.memory_space<vmem>>, vector<2x4x16x16xf32>
    tpu.vector_store %arg4[%c0_10, %c0_11, %c0_12, %c0_13], %12 {strides = array<i32>} : memref<2x4x16x16xf32, #tpu.memory_space<vmem>>, vector<2x4x16x16xf32>,
    return
  }
  func.func @transform_0(%arg0: i32) -> (i32, i32, i32, i32) {
    %c0_i32 = arith.constant 0 : i32
    %c0_i32_0 = arith.constant 0 : i32
    %c0_i32_1 = arith.constant 0 : i32
    %c0_i32_2 = arith.constant 0 : i32
    return %arg0, %c0_i32, %c0_i32_0, %c0_i32_1 : i32, i32, i32, i32
  }
  func.func @transform_1(%arg0: i32) -> (i32, i32, i32) {
    %c0_i32 = arith.constant 0 : i32
    %c0_i32_0 = arith.constant 0 : i32
    %c0_i32_1 = arith.constant 0 : i32
    return %arg0, %c0_i32, %c0_i32_0 : i32, i32, i32
  }
  func.func @transform_2(%arg0: i32) -> (i32, i32, i32) {
    %c0_i32 = arith.constant 0 : i32
    %c0_i32_0 = arith.constant 0 : i32
    %c0_i32_1 = arith.constant 0 : i32
    return %arg0, %c0_i32, %c0_i32_0 : i32, i32, i32
  }
  func.func @transform_3(%arg0: i32) -> (i32, i32, i32, i32) {
    %c0_i32 = arith.constant 0 : i32
    %c0_i32_0 = arith.constant 0 : i32
    %c0_i32_1 = arith.constant 0 : i32
    %c0_i32_2 = arith.constant 0 : i32
    return %arg0, %c0_i32, %c0_i32_0, %c0_i32_1 : i32, i32, i32, i32
  }
}

</mosaic_0001>

<llo_original>
// kernel: tpu_custom_call.1
$region0: #{tpu_custom_call.1}
  #allocation0 [shape = 'u32[]', space=smem, size = 0x4, offset = 0x4, fixed_abs, tag = 'smem constant byte address 0x4 - core index']
  #allocation1 [shape = 'u32[144,128]{1,0:T(1,128)}', space=vmem, size = 0x12000, scoped, tag = 'internal scratch']
  %s0 = inlined_call_operand.hbm [shape: bf16[2,4,16,16], index: 0, kind: input, shape index: {}]
  %s1 = inlined_call_operand.hbm [shape: bf16[2,16,16], index: 1, kind: input, shape index: {}]
  %s2 = inlined_call_operand.hbm [shape: bf16[2,16,16], index: 2, kind: input, shape index: {}]
  %s3 = inlined_call_operand.hbm [shape: f32[2,4,16,16], index: 3, kind: output, shape index: {}]
  %s4 = sld [smem:[#allocation0]]
  $region34: #{tpu_custom_call.1} parent=0
    _
  %s6 = ssub.s32 1, %s4
  %s7 = scalar_select 0, %s6, %s4
  $region1: #{tpu_custom_call.1} parent=0
    #allocation2 [shape = 'u8[32768]{0}', space=vmem, size = 0x8000, scoped, tag = 'input window, operand 0, single buffered']
    #allocation3 [shape = 's32[1]{0}', space=sflag, size = 0x4, scoped, tag = 'scoped memory for tpu_custom_call.1']
    #allocation4 [shape = 's32[1]{0}', space=sflag, size = 0x4, scoped, tag = 'scoped memory for tpu_custom_call.1']
    #allocation5 [shape = 'u8[8192]{0}', space=vmem, size = 0x2000, scoped, tag = 'input window, operand 1, single buffered']
    #allocation6 [shape = 's32[1]{0}', space=sflag, size = 0x4, scoped, tag = 'scoped memory for tpu_custom_call.1']
    #allocation7 [shape = 'u8[8192]{0}', space=vmem, size = 0x2000, scoped, tag = 'input window, operand 2, single buffered']
    #allocation8 [shape = 'u8[65536]{0}', space=vmem, size = 0x10000, scoped, tag = 'output window, operand 0, single buffered']
    %8 = vsyncpa [#allocation3], 0
    %9 = vsyncpa [#allocation6], 0
    %10 = vsyncpa [#allocation4], 0
    // Predicated region
    $region2: #{tpu_custom_call.1} parent=1 // pred_check
      _
    $region3: #{tpu_custom_call.1} parent=1 // pred_check_branch
      %12 = sbr.rel (0) target = $region5
    $region4: #{tpu_custom_call.1} parent=1 // pred_region
      %s14 = ssub.s32 1024, 1024
      %15 = vsyncadd [#allocation3], %s14
      %s16 = sshll.u32 [#allocation2], 4
      %s17 = int_to_ptr.vmem [resolvable:$true] %s16
      %22 = dma.hbm_to_vmem [thread:$0]  %s0, 1024, %s17, [#allocation3], 64, 64, 4
    $region5: #{tpu_custom_call.1} parent=1 // pred_fallthru
      _
    // Predicated region
    $region6: #{tpu_custom_call.1} parent=1 // pred_check
      _
    $region7: #{tpu_custom_call.1} parent=1 // pred_check_branch
      %24 = sbr.rel (0) target = $region9
    $region8: #{tpu_custom_call.1} parent=1 // pred_region
      %s26 = ssub.s32 256, 256
      %27 = vsyncadd [#allocation6], %s26
      %s28 = sshll.u32 [#allocation5], 4
      %s29 = int_to_ptr.vmem [resolvable:$true] %s28
      %34 = dma.hbm_to_vmem [thread:$0]  %s1, 256, %s29, [#allocation6], 64, 64, 4
    $region9: #{tpu_custom_call.1} parent=1 // pred_fallthru
      _
    // Predicated region
    $region10: #{tpu_custom_call.1} parent=1 // pred_check
      _
    $region11: #{tpu_custom_call.1} parent=1 // pred_check_branch
      %36 = sbr.rel (0) target = $region13
    $region12: #{tpu_custom_call.1} parent=1 // pred_region
      %s38 = ssub.s32 256, 256
      %39 = vsyncadd [#allocation6], %s38
      %s40 = sshll.u32 [#allocation7], 4
      %s41 = int_to_ptr.vmem [resolvable:$true] %s40
      %46 = dma.hbm_to_vmem [thread:$0]  %s2, 256, %s41, [#allocation6], 64, 64, 4
    $region13: #{tpu_custom_call.1} parent=1 // pred_fallthru
      _
    // Predicated region
    $region14: #{tpu_custom_call.1} parent=1 // pred_check
      _
    $region15: #{tpu_custom_call.1} parent=1 // pred_check_branch
      %48 = sbr.rel (0) target = $region17
    $region16: #{tpu_custom_call.1} parent=1 // pred_region
      %49 = dma.done [#allocation3], 1024
    $region17: #{tpu_custom_call.1} parent=1 // pred_fallthru
      _
    // Predicated region
    $region18: #{tpu_custom_call.1} parent=1 // pred_check
      _
    $region19: #{tpu_custom_call.1} parent=1 // pred_check_branch
      %51 = sbr.rel (0) target = $region21
    $region20: #{tpu_custom_call.1} parent=1 // pred_region
      %52 = dma.done [#allocation6], 256
    $region21: #{tpu_custom_call.1} parent=1 // pred_fallthru
      _
    // Predicated region
    $region22: #{tpu_custom_call.1} parent=1 // pred_check
      _
    $region23: #{tpu_custom_call.1} parent=1 // pred_check_branch
      %54 = sbr.rel (0) target = $region25
    $region24: #{tpu_custom_call.1} parent=1 // pred_region
      %55 = dma.done [#allocation6], 256
    $region25: #{tpu_custom_call.1} parent=1 // pred_fallthru
      _
    %v57 = vld [vmem:[#allocation2] sm:$0xf]
    %v58 = vld [vmem:[#allocation2 + $0x4] sm:$0xf]
    %v59 = vld [vmem:[#allocation2 + $0x8] sm:$0xf]
    %v60 = vld [vmem:[#allocation2 + $0xc] sm:$0xf]
    %v61 = vld [vmem:[#allocation2 + $0x10] sm:$0xf]
    %v62 = vld [vmem:[#allocation2 + $0x14] sm:$0xf]
    %v63 = vld [vmem:[#allocation2 + $0x18] sm:$0xf]
    %v64 = vld [vmem:[#allocation2 + $0x1c] sm:$0xf]
    %v65 = vld [vmem:[#allocation2 + $0x20] sm:$0xf]
    %v66 = vld [vmem:[#allocation2 + $0x24] sm:$0xf]
    %v67 = vld [vmem:[#allocation2 + $0x28] sm:$0xf]
    %v68 = vld [vmem:[#allocation2 + $0x2c] sm:$0xf]
    %v69 = vld [vmem:[#allocation2 + $0x30] sm:$0xf]
    %v70 = vld [vmem:[#allocation2 + $0x34] sm:$0xf]
    %v71 = vld [vmem:[#allocation2 + $0x38] sm:$0xf]
    %v72 = vld [vmem:[#allocation2 + $0x3c] sm:$0xf]
    %v73 = vld [vmem:[#allocation5] sm:$0xf]
    %v74 = vld [vmem:[#allocation5 + $0x4] sm:$0xf]
    %v75 = vld [vmem:[#allocation5 + $0x8] sm:$0xf]
    %v76 = vld [vmem:[#allocation5 + $0xc] sm:$0xf]
    %v77 = vld [vmem:[#allocation7] sm:$0xf]
    %v78 = vld [vmem:[#allocation7 + $0x4] sm:$0xf]
    %v79 = vld [vmem:[#allocation7 + $0x8] sm:$0xf]
    %v80 = vld [vmem:[#allocation7 + $0xc] sm:$0xf]
    %v89 = vunpack.c.l.b16 %v57
    %v90 = vunpack.c.l.b16 %v58
    %v91 = vunpack.c.l.b16 %v59
    %v92 = vunpack.c.l.b16 %v60
    %v93 = vunpack.c.l.b16 %v61
    %v94 = vunpack.c.l.b16 %v62
    %v95 = vunpack.c.l.b16 %v63
    %v96 = vunpack.c.l.b16 %v64
    %v97 = vpack.c.b16 %v90, %v89
    %v98 = vpack.c.b16 %v92, %v91
    %v99 = vpack.c.b16 %v94, %v93
    %v100 = vpack.c.b16 %v96, %v95
    %v103 = vunpack.c.l.b16 %v77
    %v104 = vunpack.c.l.b16 %v78
    %v105 = vpack.c.b16 %v104, %v103
    %vm107 = vcmask 130048
    %v109 = vsel %vm107, %v97, 0
    %v112 = vsel %vm107, %v98, 0
    %v115 = vsel %vm107, %v99, 0
    %v118 = vsel %vm107, %v100, 0
    %120 = vmatprep.subr.bf16.mxu0 0
    %121 = vmatpush1.bf16.msra.mxu0 %v105
    %122 = vmatprep.subr.bf16.mxu0 0
    %123 = vmatpush1.bf16.msra.mxu0 0
    %124 = vmatprep.subr.bf16.mxu0 0
    %125 = vmatpush1.bf16.msra.mxu0 0
    %126 = vmatprep.subr.bf16.mxu0 0
    %127 = vmatpush1.bf16.msra.mxu0 0
    %128 = vmatprep.subr.bf16.mxu0 0
    %129 = vmatpush1.bf16.msra.mxu0 0
    %130 = vmatprep.subr.bf16.mxu0 0
    %131 = vmatpush1.bf16.msra.mxu0 0
    %132 = vmatprep.subr.bf16.mxu0 0
    %133 = vmatpush1.bf16.msra.mxu0 0
    %134 = vmatprep.subr.bf16.mxu0 0
    %135 = vmatpush1.bf16.msra.mxu0 0
    %136 = vmatprep.subr.bf16.mxu0 0
    %137 = vmatpush1.bf16.msra.mxu0 0
    %138 = vmatprep.subr.bf16.mxu0 0
    %139 = vmatpush1.bf16.msra.mxu0 0
    %140 = vmatprep.subr.bf16.mxu0 0
    %141 = vmatpush1.bf16.msra.mxu0 0
    %142 = vmatprep.subr.bf16.mxu0 0
    %143 = vmatpush1.bf16.msra.mxu0 0
    %144 = vmatprep.subr.bf16.mxu0 0
    %145 = vmatpush1.bf16.msra.mxu0 0
    %146 = vmatprep.subr.bf16.mxu0 0
    %147 = vmatpush1.bf16.msra.mxu0 0
    %148 = vmatprep.subr.bf16.mxu0 0
    %149 = vmatpush1.bf16.msra.mxu0 0
    %150 = vmatprep.subr.bf16.mxu0 0
    %151 = vmatpush1.bf16.msra.mxu0 0
    %152 = vmatprep.mubr.bf16.mxu0 0
    %153 = vmatmul.mubr.bf16.gmra.mrb[0].mxu0 %v109
    %v154 = vpop.f32.mrb[0].mxu0
    %v155 = vadd.f32 0.0, %v154
    %v156 = vpop.f32.mrb[0].mxu0
    %v157 = vpop.f32.mrb[0].mxu0
    %v158 = vadd.f32 0.0, %v157
    %v159 = vpop.f32.mrb[0].mxu0
    %160 = vmatprep.mubr.bf16.mxu0 0
    %161 = vmatmul.mubr.bf16.gmra.mrb[0].mxu0 %v112
    %v162 = vpop.f32.mrb[0].mxu0
    %v163 = vadd.f32 0.0, %v162
    %v164 = vpop.f32.mrb[0].mxu0
    %v165 = vpop.f32.mrb[0].mxu0
    %v166 = vadd.f32 0.0, %v165
    %v167 = vpop.f32.mrb[0].mxu0
    %168 = vmatprep.mubr.bf16.mxu0 0
    %169 = vmatmul.mubr.bf16.gmra.mrb[0].mxu0 %v115
    %v170 = vpop.f32.mrb[0].mxu0
    %v171 = vadd.f32 0.0, %v170
    %v172 = vpop.f32.mrb[0].mxu0
    %v173 = vpop.f32.mrb[0].mxu0
    %v174 = vadd.f32 0.0, %v173
    %v175 = vpop.f32.mrb[0].mxu0
    %176 = vmatprep.mubr.bf16.mxu0 0
    %177 = vmatmul.mubr.bf16.gmra.mrb[0].mxu0 %v118
    %v178 = vpop.f32.mrb[0].mxu0
    %v179 = vadd.f32 0.0, %v178
    %v180 = vpop.f32.mrb[0].mxu0
    %v181 = vpop.f32.mrb[0].mxu0
    %v182 = vadd.f32 0.0, %v181
    %v183 = vpop.f32.mrb[0].mxu0
    %184 = vdwg.mxu0
    %v193 = vunpack.c.l.b16 %v65
    %v194 = vunpack.c.l.b16 %v66
    %v195 = vunpack.c.l.b16 %v67
    %v196 = vunpack.c.l.b16 %v68
    %v197 = vunpack.c.l.b16 %v69
    %v198 = vunpack.c.l.b16 %v70
    %v199 = vunpack.c.l.b16 %v71
    %v200 = vunpack.c.l.b16 %v72
    %v201 = vpack.c.b16 %v194, %v193
    %v202 = vpack.c.b16 %v196, %v195
    %v203 = vpack.c.b16 %v198, %v197
    %v204 = vpack.c.b16 %v200, %v199
    %v207 = vunpack.c.l.b16 %v79
    %v208 = vunpack.c.l.b16 %v80
    %v209 = vpack.c.b16 %v208, %v207
    %v212 = vsel %vm107, %v201, 0
    %v215 = vsel %vm107, %v202, 0
    %v218 = vsel %vm107, %v203, 0
    %v221 = vsel %vm107, %v204, 0
    %223 = vmatprep.subr.bf16.mxu0 0
    %224 = vmatpush1.bf16.msra.mxu0 %v209
    %225 = vmatprep.subr.bf16.mxu0 0
    %226 = vmatpush1.bf16.msra.mxu0 0
    %227 = vmatprep.subr.bf16.mxu0 0
    %228 = vmatpush1.bf16.msra.mxu0 0
    %229 = vmatprep.subr.bf16.mxu0 0
    %230 = vmatpush1.bf16.msra.mxu0 0
    %231 = vmatprep.subr.bf16.mxu0 0
    %232 = vmatpush1.bf16.msra.mxu0 0
    %233 = vmatprep.subr.bf16.mxu0 0
    %234 = vmatpush1.bf16.msra.mxu0 0
    %235 = vmatprep.subr.bf16.mxu0 0
    %236 = vmatpush1.bf16.msra.mxu0 0
    %237 = vmatprep.subr.bf16.mxu0 0
    %238 = vmatpush1.bf16.msra.mxu0 0
    %239 = vmatprep.subr.bf16.mxu0 0
    %240 = vmatpush1.bf16.msra.mxu0 0
    %241 = vmatprep.subr.bf16.mxu0 0
    %242 = vmatpush1.bf16.msra.mxu0 0
    %243 = vmatprep.subr.bf16.mxu0 0
    %244 = vmatpush1.bf16.msra.mxu0 0
    %245 = vmatprep.subr.bf16.mxu0 0
    %246 = vmatpush1.bf16.msra.mxu0 0
    %247 = vmatprep.subr.bf16.mxu0 0
    %248 = vmatpush1.bf16.msra.mxu0 0
    %249 = vmatprep.subr.bf16.mxu0 0
    %250 = vmatpush1.bf16.msra.mxu0 0
    %251 = vmatprep.subr.bf16.mxu0 0
    %252 = vmatpush1.bf16.msra.mxu0 0
    %253 = vmatprep.subr.bf16.mxu0 0
    %254 = vmatpush1.bf16.msra.mxu0 0
    %255 = vmatprep.mubr.bf16.mxu0 0
    %256 = vmatmul.mubr.bf16.gmra.mrb[0].mxu0 %v212
    %v257 = vpop.f32.mrb[0].mxu0
    %v258 = vadd.f32 0.0, %v257
    %v259 = vpop.f32.mrb[0].mxu0
    %v260 = vpop.f32.mrb[0].mxu0
    %v261 = vadd.f32 0.0, %v260
    %v262 = vpop.f32.mrb[0].mxu0
    %263 = vmatprep.mubr.bf16.mxu0 0
    %264 = vmatmul.mubr.bf16.gmra.mrb[0].mxu0 %v215
    %v265 = vpop.f32.mrb[0].mxu0
    %v266 = vadd.f32 0.0, %v265
    %v267 = vpop.f32.mrb[0].mxu0
    %v268 = vpop.f32.mrb[0].mxu0
    %v269 = vadd.f32 0.0, %v268
    %v270 = vpop.f32.mrb[0].mxu0
    %271 = vmatprep.mubr.bf16.mxu0 0
    %272 = vmatmul.mubr.bf16.gmra.mrb[0].mxu0 %v218
    %v273 = vpop.f32.mrb[0].mxu0
    %v274 = vadd.f32 0.0, %v273
    %v275 = vpop.f32.mrb[0].mxu0
    %v276 = vpop.f32.mrb[0].mxu0
    %v277 = vadd.f32 0.0, %v276
    %v278 = vpop.f32.mrb[0].mxu0
    %279 = vmatprep.mubr.bf16.mxu0 0
    %280 = vmatmul.mubr.bf16.gmra.mrb[0].mxu0 %v221
    %v281 = vpop.f32.mrb[0].mxu0
    %v282 = vadd.f32 0.0, %v281
    %v283 = vpop.f32.mrb[0].mxu0
    %v284 = vpop.f32.mrb[0].mxu0
    %v285 = vadd.f32 0.0, %v284
    %v286 = vpop.f32.mrb[0].mxu0
    %287 = vdwg.mxu0
    %v288 = vpack.c.bf16 %v158, %v155
    %v289 = vpack.c.bf16 %v166, %v163
    %v290 = vpack.c.bf16 %v174, %v171
    %v291 = vpack.c.bf16 %v182, %v179
    %v292 = vpack.c.bf16 %v261, %v258
    %v293 = vpack.c.bf16 %v269, %v266
    %v294 = vpack.c.bf16 %v277, %v274
    %v295 = vpack.c.bf16 %v285, %v282
    %v298 = vunpack.c.l.b16 %v73
    %v299 = vunpack.c.l.b16 %v74
    %v300 = vpack.c.b16 %v299, %v298
    %v302 = vsel %vm107, %v300, 0
    %304 = vmatprep.subr.bf16.mxu0 0
    %305 = vmatpush1.bf16.msra.mxu0 %v288
    %306 = vmatprep.subr.bf16.mxu0 0
    %307 = vmatpush1.bf16.msra.mxu0 0
    %308 = vmatprep.subr.bf16.mxu0 0
    %309 = vmatpush1.bf16.msra.mxu0 0
    %310 = vmatprep.subr.bf16.mxu0 0
    %311 = vmatpush1.bf16.msra.mxu0 0
    %312 = vmatprep.subr.bf16.mxu0 0
    %313 = vmatpush1.bf16.msra.mxu0 0
    %314 = vmatprep.subr.bf16.mxu0 0
    %315 = vmatpush1.bf16.msra.mxu0 0
    %316 = vmatprep.subr.bf16.mxu0 0
    %317 = vmatpush1.bf16.msra.mxu0 0
    %318 = vmatprep.subr.bf16.mxu0 0
    %319 = vmatpush1.bf16.msra.mxu0 0
    %320 = vmatprep.subr.bf16.mxu0 0
    %321 = vmatpush1.bf16.msra.mxu0 0
    %322 = vmatprep.subr.bf16.mxu0 0
    %323 = vmatpush1.bf16.msra.mxu0 0
    %324 = vmatprep.subr.bf16.mxu0 0
    %325 = vmatpush1.bf16.msra.mxu0 0
    %326 = vmatprep.subr.bf16.mxu0 0
    %327 = vmatpush1.bf16.msra.mxu0 0
    %328 = vmatprep.subr.bf16.mxu0 0
    %329 = vmatpush1.bf16.msra.mxu0 0
    %330 = vmatprep.subr.bf16.mxu0 0
    %331 = vmatpush1.bf16.msra.mxu0 0
    %332 = vmatprep.subr.bf16.mxu0 0
    %333 = vmatpush1.bf16.msra.mxu0 0
    %334 = vmatprep.subr.bf16.mxu0 0
    %335 = vmatpush1.bf16.msra.mxu0 0
    %336 = vmatprep.mubr.bf16.mxu0 0
    %337 = vmatmul.mubr.bf16.gmra.mrb[0].mxu0 %v302
    %v338 = vpop.f32.mrb[0].mxu0
    %v339 = vadd.f32 0.0, %v338
    %v340 = vpop.f32.mrb[0].mxu0
    %v341 = vpop.f32.mrb[0].mxu0
    %v342 = vadd.f32 0.0, %v341
    %v343 = vpop.f32.mrb[0].mxu0
    %344 = vdwg.mxu0
    %345 = vmatprep.subr.bf16.mxu0 0
    %346 = vmatpush1.bf16.msra.mxu0 %v289
    %347 = vmatprep.subr.bf16.mxu0 0
    %348 = vmatpush1.bf16.msra.mxu0 0
    %349 = vmatprep.subr.bf16.mxu0 0
    %350 = vmatpush1.bf16.msra.mxu0 0
    %351 = vmatprep.subr.bf16.mxu0 0
    %352 = vmatpush1.bf16.msra.mxu0 0
    %353 = vmatprep.subr.bf16.mxu0 0
    %354 = vmatpush1.bf16.msra.mxu0 0
    %355 = vmatprep.subr.bf16.mxu0 0
    %356 = vmatpush1.bf16.msra.mxu0 0
    %357 = vmatprep.subr.bf16.mxu0 0
    %358 = vmatpush1.bf16.msra.mxu0 0
    %359 = vmatprep.subr.bf16.mxu0 0
    %360 = vmatpush1.bf16.msra.mxu0 0
    %361 = vmatprep.subr.bf16.mxu0 0
    %362 = vmatpush1.bf16.msra.mxu0 0
    %363 = vmatprep.subr.bf16.mxu0 0
    %364 = vmatpush1.bf16.msra.mxu0 0
    %365 = vmatprep.subr.bf16.mxu0 0
    %366 = vmatpush1.bf16.msra.mxu0 0
    %367 = vmatprep.subr.bf16.mxu0 0
    %368 = vmatpush1.bf16.msra.mxu0 0
    %369 = vmatprep.subr.bf16.mxu0 0
    %370 = vmatpush1.bf16.msra.mxu0 0
    %371 = vmatprep.subr.bf16.mxu0 0
    %372 = vmatpush1.bf16.msra.mxu0 0
    %373 = vmatprep.subr.bf16.mxu0 0
    %374 = vmatpush1.bf16.msra.mxu0 0
    %375 = vmatprep.subr.bf16.mxu0 0
    %376 = vmatpush1.bf16.msra.mxu0 0
    %377 = vmatprep.mubr.bf16.mxu0 0
    %378 = vmatmul.mubr.bf16.gmra.mrb[0].mxu0 %v302
    %v379 = vpop.f32.mrb[0].mxu0
    %v380 = vadd.f32 0.0, %v379
    %v381 = vpop.f32.mrb[0].mxu0
    %v382 = vpop.f32.mrb[0].mxu0
    %v383 = vadd.f32 0.0, %v382
    %v384 = vpop.f32.mrb[0].mxu0
    %385 = vdwg.mxu0
    %386 = vmatprep.subr.bf16.mxu0 0
    %387 = vmatpush1.bf16.msra.mxu0 %v290
    %388 = vmatprep.subr.bf16.mxu0 0
    %389 = vmatpush1.bf16.msra.mxu0 0
    %390 = vmatprep.subr.bf16.mxu0 0
    %391 = vmatpush1.bf16.msra.mxu0 0
    %392 = vmatprep.subr.bf16.mxu0 0
    %393 = vmatpush1.bf16.msra.mxu0 0
    %394 = vmatprep.subr.bf16.mxu0 0
    %395 = vmatpush1.bf16.msra.mxu0 0
    %396 = vmatprep.subr.bf16.mxu0 0
    %397 = vmatpush1.bf16.msra.mxu0 0
    %398 = vmatprep.subr.bf16.mxu0 0
    %399 = vmatpush1.bf16.msra.mxu0 0
    %400 = vmatprep.subr.bf16.mxu0 0
    %401 = vmatpush1.bf16.msra.mxu0 0
    %402 = vmatprep.subr.bf16.mxu0 0
    %403 = vmatpush1.bf16.msra.mxu0 0
    %404 = vmatprep.subr.bf16.mxu0 0
    %405 = vmatpush1.bf16.msra.mxu0 0
    %406 = vmatprep.subr.bf16.mxu0 0
    %407 = vmatpush1.bf16.msra.mxu0 0
    %408 = vmatprep.subr.bf16.mxu0 0
    %409 = vmatpush1.bf16.msra.mxu0 0
    %410 = vmatprep.subr.bf16.mxu0 0
    %411 = vmatpush1.bf16.msra.mxu0 0
    %412 = vmatprep.subr.bf16.mxu0 0
    %413 = vmatpush1.bf16.msra.mxu0 0
    %414 = vmatprep.subr.bf16.mxu0 0
    %415 = vmatpush1.bf16.msra.mxu0 0
    %416 = vmatprep.subr.bf16.mxu0 0
    %417 = vmatpush1.bf16.msra.mxu0 0
    %418 = vmatprep.mubr.bf16.mxu0 0
    %419 = vmatmul.mubr.bf16.gmra.mrb[0].mxu0 %v302
    %v420 = vpop.f32.mrb[0].mxu0
    %v421 = vadd.f32 0.0, %v420
    %v422 = vpop.f32.mrb[0].mxu0
    %v423 = vpop.f32.mrb[0].mxu0
    %v424 = vadd.f32 0.0, %v423
    %v425 = vpop.f32.mrb[0].mxu0
    %426 = vdwg.mxu0
    %427 = vmatprep.subr.bf16.mxu0 0
    %428 = vmatpush1.bf16.msra.mxu0 %v291
    %429 = vmatprep.subr.bf16.mxu0 0
    %430 = vmatpush1.bf16.msra.mxu0 0
    %431 = vmatprep.subr.bf16.mxu0 0
    %432 = vmatpush1.bf16.msra.mxu0 0
    %433 = vmatprep.subr.bf16.mxu0 0
    %434 = vmatpush1.bf16.msra.mxu0 0
    %435 = vmatprep.subr.bf16.mxu0 0
    %436 = vmatpush1.bf16.msra.mxu0 0
    %437 = vmatprep.subr.bf16.mxu0 0
    %438 = vmatpush1.bf16.msra.mxu0 0
    %439 = vmatprep.subr.bf16.mxu0 0
    %440 = vmatpush1.bf16.msra.mxu0 0
    %441 = vmatprep.subr.bf16.mxu0 0
    %442 = vmatpush1.bf16.msra.mxu0 0
    %443 = vmatprep.subr.bf16.mxu0 0
    %444 = vmatpush1.bf16.msra.mxu0 0
    %445 = vmatprep.subr.bf16.mxu0 0
    %446 = vmatpush1.bf16.msra.mxu0 0
    %447 = vmatprep.subr.bf16.mxu0 0
    %448 = vmatpush1.bf16.msra.mxu0 0
    %449 = vmatprep.subr.bf16.mxu0 0
    %450 = vmatpush1.bf16.msra.mxu0 0
    %451 = vmatprep.subr.bf16.mxu0 0
    %452 = vmatpush1.bf16.msra.mxu0 0
    %453 = vmatprep.subr.bf16.mxu0 0
    %454 = vmatpush1.bf16.msra.mxu0 0
    %455 = vmatprep.subr.bf16.mxu0 0
    %456 = vmatpush1.bf16.msra.mxu0 0
    %457 = vmatprep.subr.bf16.mxu0 0
    %458 = vmatpush1.bf16.msra.mxu0 0
    %459 = vmatprep.mubr.bf16.mxu0 0
    %460 = vmatmul.mubr.bf16.gmra.mrb[0].mxu0 %v302
    %v461 = vpop.f32.mrb[0].mxu0
    %v462 = vadd.f32 0.0, %v461
    %v463 = vpop.f32.mrb[0].mxu0
    %v464 = vpop.f32.mrb[0].mxu0
    %v465 = vadd.f32 0.0, %v464
    %v466 = vpop.f32.mrb[0].mxu0
    %467 = vdwg.mxu0
    %v470 = vunpack.c.l.b16 %v75
    %v471 = vunpack.c.l.b16 %v76
    %v472 = vpack.c.b16 %v471, %v470
    %v474 = vsel %vm107, %v472, 0
    %476 = vmatprep.subr.bf16.mxu0 0
    %477 = vmatpush1.bf16.msra.mxu0 %v292
    %478 = vmatprep.subr.bf16.mxu0 0
    %479 = vmatpush1.bf16.msra.mxu0 0
    %480 = vmatprep.subr.bf16.mxu0 0
    %481 = vmatpush1.bf16.msra.mxu0 0
    %482 = vmatprep.subr.bf16.mxu0 0
    %483 = vmatpush1.bf16.msra.mxu0 0
    %484 = vmatprep.subr.bf16.mxu0 0
    %485 = vmatpush1.bf16.msra.mxu0 0
    %486 = vmatprep.subr.bf16.mxu0 0
    %487 = vmatpush1.bf16.msra.mxu0 0
    %488 = vmatprep.subr.bf16.mxu0 0
    %489 = vmatpush1.bf16.msra.mxu0 0
    %490 = vmatprep.subr.bf16.mxu0 0
    %491 = vmatpush1.bf16.msra.mxu0 0
    %492 = vmatprep.subr.bf16.mxu0 0
    %493 = vmatpush1.bf16.msra.mxu0 0
    %494 = vmatprep.subr.bf16.mxu0 0
    %495 = vmatpush1.bf16.msra.mxu0 0
    %496 = vmatprep.subr.bf16.mxu0 0
    %497 = vmatpush1.bf16.msra.mxu0 0
    %498 = vmatprep.subr.bf16.mxu0 0
    %499 = vmatpush1.bf16.msra.mxu0 0
    %500 = vmatprep.subr.bf16.mxu0 0
    %501 = vmatpush1.bf16.msra.mxu0 0
    %502 = vmatprep.subr.bf16.mxu0 0
    %503 = vmatpush1.bf16.msra.mxu0 0
    %504 = vmatprep.subr.bf16.mxu0 0
    %505 = vmatpush1.bf16.msra.mxu0 0
    %506 = vmatprep.subr.bf16.mxu0 0
    %507 = vmatpush1.bf16.msra.mxu0 0
    %508 = vmatprep.mubr.bf16.mxu0 0
    %509 = vmatmul.mubr.bf16.gmra.mrb[0].mxu0 %v474
    %v510 = vpop.f32.mrb[0].mxu0
    %v511 = vadd.f32 0.0, %v510
    %v512 = vpop.f32.mrb[0].mxu0
    %v513 = vpop.f32.mrb[0].mxu0
    %v514 = vadd.f32 0.0, %v513
    %v515 = vpop.f32.mrb[0].mxu0
    %516 = vdwg.mxu0
    %517 = vmatprep.subr.bf16.mxu0 0
    %518 = vmatpush1.bf16.msra.mxu0 %v293
    %519 = vmatprep.subr.bf16.mxu0 0
    %520 = vmatpush1.bf16.msra.mxu0 0
    %521 = vmatprep.subr.bf16.mxu0 0
    %522 = vmatpush1.bf16.msra.mxu0 0
    %523 = vmatprep.subr.bf16.mxu0 0
    %524 = vmatpush1.bf16.msra.mxu0 0
    %525 = vmatprep.subr.bf16.mxu0 0
    %526 = vmatpush1.bf16.msra.mxu0 0
    %527 = vmatprep.subr.bf16.mxu0 0
    %528 = vmatpush1.bf16.msra.mxu0 0
    %529 = vmatprep.subr.bf16.mxu0 0
    %530 = vmatpush1.bf16.msra.mxu0 0
    %531 = vmatprep.subr.bf16.mxu0 0
    %532 = vmatpush1.bf16.msra.mxu0 0
    %533 = vmatprep.subr.bf16.mxu0 0
    %534 = vmatpush1.bf16.msra.mxu0 0
    %535 = vmatprep.subr.bf16.mxu0 0
    %536 = vmatpush1.bf16.msra.mxu0 0
    %537 = vmatprep.subr.bf16.mxu0 0
    %538 = vmatpush1.bf16.msra.mxu0 0
    %539 = vmatprep.subr.bf16.mxu0 0
    %540 = vmatpush1.bf16.msra.mxu0 0
    %541 = vmatprep.subr.bf16.mxu0 0
    %542 = vmatpush1.bf16.msra.mxu0 0
    %543 = vmatprep.subr.bf16.mxu0 0
    %544 = vmatpush1.bf16.msra.mxu0 0
    %545 = vmatprep.subr.bf16.mxu0 0
    %546 = vmatpush1.bf16.msra.mxu0 0
    %547 = vmatprep.subr.bf16.mxu0 0
    %548 = vmatpush1.bf16.msra.mxu0 0
    %549 = vmatprep.mubr.bf16.mxu0 0
    %550 = vmatmul.mubr.bf16.gmra.mrb[0].mxu0 %v474
    %v551 = vpop.f32.mrb[0].mxu0
    %v552 = vadd.f32 0.0, %v551
    %v553 = vpop.f32.mrb[0].mxu0
    %v554 = vpop.f32.mrb[0].mxu0
    %v555 = vadd.f32 0.0, %v554
    %v556 = vpop.f32.mrb[0].mxu0
    %557 = vdwg.mxu0
    %558 = vmatprep.subr.bf16.mxu0 0
    %559 = vmatpush1.bf16.msra.mxu0 %v294
    %560 = vmatprep.subr.bf16.mxu0 0
    %561 = vmatpush1.bf16.msra.mxu0 0
    %562 = vmatprep.subr.bf16.mxu0 0
    %563 = vmatpush1.bf16.msra.mxu0 0
    %564 = vmatprep.subr.bf16.mxu0 0
    %565 = vmatpush1.bf16.msra.mxu0 0
    %566 = vmatprep.subr.bf16.mxu0 0
    %567 = vmatpush1.bf16.msra.mxu0 0
    %568 = vmatprep.subr.bf16.mxu0 0
    %569 = vmatpush1.bf16.msra.mxu0 0
    %570 = vmatprep.subr.bf16.mxu0 0
    %571 = vmatpush1.bf16.msra.mxu0 0
    %572 = vmatprep.subr.bf16.mxu0 0
    %573 = vmatpush1.bf16.msra.mxu0 0
    %574 = vmatprep.subr.bf16.mxu0 0
    %575 = vmatpush1.bf16.msra.mxu0 0
    %576 = vmatprep.subr.bf16.mxu0 0
    %577 = vmatpush1.bf16.msra.mxu0 0
    %578 = vmatprep.subr.bf16.mxu0 0
    %579 = vmatpush1.bf16.msra.mxu0 0
    %580 = vmatprep.subr.bf16.mxu0 0
    %581 = vmatpush1.bf16.msra.mxu0 0
    %582 = vmatprep.subr.bf16.mxu0 0
    %583 = vmatpush1.bf16.msra.mxu0 0
    %584 = vmatprep.subr.bf16.mxu0 0
    %585 = vmatpush1.bf16.msra.mxu0 0
    %586 = vmatprep.subr.bf16.mxu0 0
    %587 = vmatpush1.bf16.msra.mxu0 0
    %588 = vmatprep.subr.bf16.mxu0 0
    %589 = vmatpush1.bf16.msra.mxu0 0
    %590 = vmatprep.mubr.bf16.mxu0 0
    %591 = vmatmul.mubr.bf16.gmra.mrb[0].mxu0 %v474
    %v592 = vpop.f32.mrb[0].mxu0
    %v593 = vadd.f32 0.0, %v592
    %v594 = vpop.f32.mrb[0].mxu0
    %v595 = vpop.f32.mrb[0].mxu0
    %v596 = vadd.f32 0.0, %v595
    %v597 = vpop.f32.mrb[0].mxu0
    %598 = vdwg.mxu0
    %599 = vmatprep.subr.bf16.mxu0 0
    %600 = vmatpush1.bf16.msra.mxu0 %v295
    %601 = vmatprep.subr.bf16.mxu0 0
    %602 = vmatpush1.bf16.msra.mxu0 0
    %603 = vmatprep.subr.bf16.mxu0 0
    %604 = vmatpush1.bf16.msra.mxu0 0
    %605 = vmatprep.subr.bf16.mxu0 0
    %606 = vmatpush1.bf16.msra.mxu0 0
    %607 = vmatprep.subr.bf16.mxu0 0
    %608 = vmatpush1.bf16.msra.mxu0 0
    %609 = vmatprep.subr.bf16.mxu0 0
    %610 = vmatpush1.bf16.msra.mxu0 0
    %611 = vmatprep.subr.bf16.mxu0 0
    %612 = vmatpush1.bf16.msra.mxu0 0
    %613 = vmatprep.subr.bf16.mxu0 0
    %614 = vmatpush1.bf16.msra.mxu0 0
    %615 = vmatprep.subr.bf16.mxu0 0
    %616 = vmatpush1.bf16.msra.mxu0 0
    %617 = vmatprep.subr.bf16.mxu0 0
    %618 = vmatpush1.bf16.msra.mxu0 0
    %619 = vmatprep.subr.bf16.mxu0 0
    %620 = vmatpush1.bf16.msra.mxu0 0
    %621 = vmatprep.subr.bf16.mxu0 0
    %622 = vmatpush1.bf16.msra.mxu0 0
    %623 = vmatprep.subr.bf16.mxu0 0
    %624 = vmatpush1.bf16.msra.mxu0 0
    %625 = vmatprep.subr.bf16.mxu0 0
    %626 = vmatpush1.bf16.msra.mxu0 0
    %627 = vmatprep.subr.bf16.mxu0 0
    %628 = vmatpush1.bf16.msra.mxu0 0
    %629 = vmatprep.subr.bf16.mxu0 0
    %630 = vmatpush1.bf16.msra.mxu0 0
    %631 = vmatprep.mubr.bf16.mxu0 0
    %632 = vmatmul.mubr.bf16.gmra.mrb[0].mxu0 %v474
    %v633 = vpop.f32.mrb[0].mxu0
    %v634 = vadd.f32 0.0, %v633
    %v635 = vpop.f32.mrb[0].mxu0
    %v636 = vpop.f32.mrb[0].mxu0
    %v637 = vadd.f32 0.0, %v636
    %v638 = vpop.f32.mrb[0].mxu0
    %639 = vdwg.mxu0
    %640 = vst.msk [vmem:[#allocation8] sm:$0xff] %vm107, %v339
    %641 = vst.msk [vmem:[#allocation8 + $0x8] sm:$0xff] %vm107, %v342
    %642 = vst.msk [vmem:[#allocation8 + $0x10] sm:$0xff] %vm107, %v380
    %643 = vst.msk [vmem:[#allocation8 + $0x18] sm:$0xff] %vm107, %v383
    %644 = vst.msk [vmem:[#allocation8 + $0x20] sm:$0xff] %vm107, %v421
    %645 = vst.msk [vmem:[#allocation8 + $0x28] sm:$0xff] %vm107, %v424
    %646 = vst.msk [vmem:[#allocation8 + $0x30] sm:$0xff] %vm107, %v462
    %647 = vst.msk [vmem:[#allocation8 + $0x38] sm:$0xff] %vm107, %v465
    %648 = vst.msk [vmem:[#allocation8 + $0x40] sm:$0xff] %vm107, %v511
    %649 = vst.msk [vmem:[#allocation8 + $0x48] sm:$0xff] %vm107, %v514
    %650 = vst.msk [vmem:[#allocation8 + $0x50] sm:$0xff] %vm107, %v552
    %651 = vst.msk [vmem:[#allocation8 + $0x58] sm:$0xff] %vm107, %v555
    %652 = vst.msk [vmem:[#allocation8 + $0x60] sm:$0xff] %vm107, %v593
    %653 = vst.msk [vmem:[#allocation8 + $0x68] sm:$0xff] %vm107, %v596
    %654 = vst.msk [vmem:[#allocation8 + $0x70] sm:$0xff] %vm107, %v634
    %655 = vst.msk [vmem:[#allocation8 + $0x78] sm:$0xff] %vm107, %v637
    // Predicated region
    $region26: #{tpu_custom_call.1} parent=1 // pred_check
      _
    $region27: #{tpu_custom_call.1} parent=1 // pred_check_branch
      %657 = sbr.rel (0) target = $region29
    $region28: #{tpu_custom_call.1} parent=1 // pred_region
      %s659 = ssub.s32 2048, 2048
      %660 = vsyncadd [#allocation4], %s659
      %s661 = sshll.u32 [#allocation8], 4
      %s662 = int_to_ptr.vmem [resolvable:$true] %s661
      %667 = dma.vmem_to_hbm [thread:$0]  %s662, 2048, %s3, [#allocation4], 128, 128, 8
    $region29: #{tpu_custom_call.1} parent=1 // pred_fallthru
      _
    // Predicated region
    $region30: #{tpu_custom_call.1} parent=1 // pred_check
      _
    $region31: #{tpu_custom_call.1} parent=1 // pred_check_branch
      %669 = sbr.rel (0) target = $region33
    $region32: #{tpu_custom_call.1} parent=1 // pred_region
      %670 = dma.done [#allocation4], 2048
    $region33: #{tpu_custom_call.1} parent=1 // pred_fallthru
      _
    %671 = vsyncpa [#allocation3], 1
    %672 = vsyncpa [#allocation6], 1
    %673 = vsyncpa [#allocation4], 1

</llo_original>
